<compile_context>
chip_gen: v7x
topology: tpu7x:2x2x1
jax: 0.10.0
libtpu: 0.0.40
codegen_flags: <defaults>
</compile_context>

<pallas_src>
import numpy as np
import jax
import jax.numpy as jnp
from jax.experimental import pallas as pl
from jax.experimental.pallas import tpu as pltpu

B, C_IN, H, W = 2, 4, 16, 16
C_OUT = 16
K = 3
PH, PW = 8, 8
S = H * W               # 256 spatial positions
P = PH * PW             # 64 pooled positions
KK = K * K * C_IN       # 36 im2col features
KK1 = KK + 1            # +1 constant row that carries the conv bias
N_CLS = 10
CN = C_OUT * N_CLS      # 160 columns of the folded pool+flatten+FC weight

# pool bin of spatial position s = h*16 + w  ->  p = (h//2)*8 + (w//2)
_P_OF_S = ((np.arange(H) // 2)[:, None] * PW + (np.arange(W) // 2)[None, :]).reshape(S)


# ---------------------- fused Pallas kernel (single invocation) ----------------------

def fused_kernel(pt_ref, wblk_ref, wcs_ref, bf_ref, o_ref):
    # pt_ref  : (B*KK1, S) = (74, 256)  im2col patches (+ ones row) for both batches
    # wblk_ref: (B*C_OUT, B*KK1) = (32, 74)  block-diag conv weight, bias folded in
    # wcs_ref : (S, CN) = (256, 160)    pool + flatten + FC folded into one weight
    # bf_ref  : (1, N_CLS)              FC bias
    # o_ref   : (B, N_CLS)              logits for both batch elements
    f32 = jnp.float32

    # Conv2d(4->16,k=3,p=1) + bias + ReLU for BOTH batch elements in one matmul.
    conv = jnp.dot(wblk_ref[...], pt_ref[...], preferred_element_type=f32)   # (32, 256)
    conv = jnp.maximum(conv, 0.0)

    # Folded pool + flatten + FC:
    #   t[b*16+c', co*10+n] = sum_s conv[b*16+c', s] * wcs[s, co*10+n]
    t = jnp.dot(conv, wcs_ref[...], preferred_element_type=f32)              # (32, 160)

    # 0/1 selector matrices regenerated in-kernel from 2-D iotas (compare /
    # select / and only: no div, no mod, no operand DMAs).
    r = jax.lax.broadcasted_iota(jnp.int32, (B * C_OUT, CN), 0)
    j = jax.lax.broadcasted_iota(jnp.int32, (B * C_OUT, CN), 1)
    c_of_r = jnp.where(r >= C_OUT, r - C_OUT, r)                 # row channel (B == 2)
    mask = jnp.where(jnp.logical_and(j >= c_of_r * N_CLS,
                                     j < (c_of_r + 1) * N_CLS), 1.0, 0.0)    # (32, 160)

    bi = jax.lax.broadcasted_iota(jnp.int32, (B, B * C_OUT), 0)
    ri = jax.lax.broadcasted_iota(jnp.int32, (B, B * C_OUT), 1)
    bsum = jnp.where(jnp.logical_and(ri >= bi * C_OUT,
                                     ri < (bi + 1) * C_OUT), 1.0, 0.0)       # (2, 32)

    jj = jax.lax.broadcasted_iota(jnp.int32, (CN, N_CLS), 0)
    nn = jax.lax.broadcasted_iota(jnp.int32, (CN, N_CLS), 1)
    hit = (jj == nn)                                  # co = 0 term: j == 0*10 + n
    for c in range(1, C_OUT):                         # unrolled: j == c*10 + n
        hit = jnp.logical_or(hit, jj == c * N_CLS + nn)
    gsum = jnp.where(hit, 1.0, 0.0)                                          # (160, 10)

    # Keep only the c' == co diagonal, sum per batch, collapse the 16 channel
    # groups into the 10 logits, add the FC bias.
    part = jnp.dot(bsum, t * mask, preferred_element_type=f32)               # (2, 160)
    o_ref[...] = jnp.dot(part, gsum, preferred_element_type=f32) + bf_ref[...]  # (2, 10)


# ---------------------- one-time static weight folding (hoisted) ----------------------

def prepare_params(wc, bc, wf, bf):
    """Fold all static per-model constants once; only im2col(x) stays per-call."""
    # conv weight (C_OUT, C_IN, 3, 3) -> (co, dy, dx, ci) -> (C_OUT, KK), bias as extra col
    wct = jnp.transpose(wc, (0, 2, 3, 1)).reshape(C_OUT, KK)
    wct_aug = jnp.concatenate([wct, bc.reshape(C_OUT, 1)], axis=1)           # (16, 37)
    # block-diagonal over batch so both batch elements use one matmul
    wblk = jnp.kron(jnp.eye(B, dtype=jnp.float32), wct_aug)                  # (32, 74)

    # Fold 2x2 avg-pool + PyTorch (c,h,w) flatten + FC weight into one matrix:
    #   wcs[s, co*10 + n] = 0.25 * wf[n, co*64 + p_of_s[s]]
    wf_r = wf.reshape(N_CLS, C_OUT, P)
    wcs = 0.25 * jnp.transpose(wf_r[:, :, _P_OF_S], (2, 1, 0)).reshape(S, CN)  # (256, 160)

    return wblk, wcs, bf.reshape(1, N_CLS)


# ---------------------- per-call forward: im2col glue + one pallas_call ----------------------

@jax.jit
def cnn_forward(x_nchw, wblk, wcs, bf_row):
    # im2col in transposed (feature x position) layout, straight from NCHW:
    #   patches[b, (dy*3+dx)*4 + ci, h*16 + w] = xpad[b, ci, h+dy, w+dx]
    xpad = jnp.pad(x_nchw, ((0, 0), (0, 0), (1, 1), (1, 1)))
    cols = [xpad[:, :, dy:dy + H, dx:dx + W] for dy in range(K) for dx in range(K)]
    patches = jnp.concatenate(cols, axis=1).reshape(B, KK, S)
    ones_row = jnp.ones((B, 1, S), jnp.float32)                    # carries the conv bias
    patches_stk = jnp.concatenate([patches, ones_row], axis=1).reshape(B * KK1, S)

    vmem = pl.BlockSpec(memory_space=pltpu.MemorySpace.VMEM)
    out = pl.pallas_call(
        fused_kernel,
        out_shape=jax.ShapeDtypeStruct((B, N_CLS), jnp.float32),
        in_specs=[vmem, vmem, vmem, vmem],
        out_specs=vmem,
    )(patches_stk, wblk, wcs, bf_row)
    return out


# ---------------------- pure-JAX reference for verification ----------------------

def reference(x_nchw, wc, bc, wf, bf):
    conv = jax.lax.conv_general_dilated(
        x_nchw, wc, window_strides=(1, 1), padding=((1, 1), (1, 1)),
        dimension_numbers=("NCHW", "OIHW", "NCHW"))
    conv = jax.nn.relu(conv + bc[None, :, None, None])
    pooled = conv.reshape(B, C_OUT, PH, 2, PW, 2).mean(axis=(3, 5))
    feat = pooled.reshape(B, -1)
    return feat @ wf.T + bf


if __name__ == "__main__":
    key = jax.random.PRNGKey(0)
    k1, k2, k3, k4, kx = jax.random.split(key, 5)
    # deterministic synthetic parameters (shapes from nn.Module.__init__)
    wc = jax.random.normal(k1, (C_OUT, C_IN, K, K), jnp.float32) * 0.1
    bc = jax.random.normal(k2, (C_OUT,), jnp.float32) * 0.1
    wf = jax.random.normal(k3, (N_CLS, C_OUT * P), jnp.float32) * 0.02
    bf = jax.random.normal(k4, (N_CLS,), jnp.float32) * 0.02
    x = jax.random.normal(kx, (B, C_IN, H, W), jnp.float32)

    # one-time static fold (hoisted out of the per-call path)
    wblk, wcs, bf_row = prepare_params(wc, bc, wf, bf)

    out = jax.block_until_ready(cnn_forward(x, wblk, wcs, bf_row))
    ref = jax.block_until_ready(reference(x, wc, bc, wf, bf))

    assert out.shape == (B, N_CLS)
    assert jnp.allclose(out, ref, rtol=1e-4, atol=1e-4)
    print("KERNEL_OK")
</pallas_src>

<mosaic_0001>
module attributes {stable_mosaic.version = 11 : i64} {
  func.func @fused_kernel(%arg0: memref<74x256xf32, #tpu.memory_space<vmem>>, %arg1: memref<32x74xf32, #tpu.memory_space<vmem>>, %arg2: memref<256x160xf32, #tpu.memory_space<vmem>>, %arg3: memref<1x10xf32, #tpu.memory_space<vmem>>, %arg4: memref<2x10xf32, #tpu.memory_space<vmem>>) attributes {dimension_semantics = [], scalar_prefetch = 0 : i64, scratch_operands = 0 : i64, tpu.core_type = #tpu.core_type<tc>} {
    %c0 = arith.constant 0 : index
    %c0_0 = arith.constant 0 : index
    %0 = vector.load %arg1[%c0, %c0_0] : memref<32x74xf32, #tpu.memory_space<vmem>>, vector<32x74xf32>
    %c0_1 = arith.constant 0 : index
    %c0_2 = arith.constant 0 : index
    %1 = vector.load %arg0[%c0_1, %c0_2] : memref<74x256xf32, #tpu.memory_space<vmem>>, vector<74x256xf32>
    %cst = arith.constant dense<0.000000e+00> : vector<32x256xf32>
    %2 = tpu.matmul %0, %1, %cst {dimension_numbers = #tpu.dot_dimension_numbers<[1], [0], [0], [1], [0, 0, 1, 1], [], []>} : vector<32x74xf32>, vector<74x256xf32>, vector<32x256xf32> -> vector<32x256xf32>
    %cst_3 = arith.constant 0.000000e+00 : f32
    %3 = vector.broadcast %cst_3 : f32 to vector<32x256xf32>
    %4 = arith.maximumf %2, %3 : vector<32x256xf32>
    %c0_4 = arith.constant 0 : index
    %c0_5 = arith.constant 0 : index
    %5 = vector.load %arg2[%c0_4, %c0_5] : memref<256x160xf32, #tpu.memory_space<vmem>>, vector<256x160xf32>
    %cst_6 = arith.constant dense<0.000000e+00> : vector<32x160xf32>
    %6 = tpu.matmul %4, %5, %cst_6 {dimension_numbers = #tpu.dot_dimension_numbers<[1], [0], [0], [1], [0, 0, 1, 1], [], []>} : vector<32x256xf32>, vector<256x160xf32>, vector<32x160xf32> -> vector<32x160xf32>
    %7 = tpu.iota {dimensions = array<i32: 0>} : vector<32x160xi32>
    %8 = tpu.iota {dimensions = array<i32: 1>} : vector<32x160xi32>
    %c16_i32 = arith.constant 16 : i32
    %9 = vector.broadcast %c16_i32 : i32 to vector<32x160xi32>
    %10 = arith.cmpi sge, %7, %9 : vector<32x160xi32>
    %c16_i32_7 = arith.constant 16 : i32
    %11 = vector.broadcast %c16_i32_7 : i32 to vector<32x160xi32>
    %12 = arith.subi %7, %11 : vector<32x160xi32>
    %13 = arith.select %10, %12, %7 : vector<32x160xi1>, vector<32x160xi32>
    %c10_i32 = arith.constant 10 : i32
    %14 = vector.broadcast %c10_i32 : i32 to vector<32x160xi32>
    %15 = arith.muli %13, %14 : vector<32x160xi32>
    %16 = arith.cmpi sge, %8, %15 : vector<32x160xi32>
    %c1_i32 = arith.constant 1 : i32
    %17 = vector.broadcast %c1_i32 : i32 to vector<32x160xi32>
    %18 = arith.addi %13, %17 : vector<32x160xi32>
    %c10_i32_8 = arith.constant 10 : i32
    %19 = vector.broadcast %c10_i32_8 : i32 to vector<32x160xi32>
    %20 = arith.muli %18, %19 : vector<32x160xi32>
    %21 = arith.cmpi slt, %8, %20 : vector<32x160xi32>
    %22 = arith.andi %16, %21 : vector<32x160xi1>
    %cst_9 = arith.constant 1.000000e+00 : f32
    %cst_10 = arith.constant 0.000000e+00 : f32
    %23 = vector.broadcast %cst_9 : f32 to vector<32x160xf32>
    %24 = vector.broadcast %cst_10 : f32 to vector<32x160xf32>
    %25 = arith.select %22, %23, %24 : vector<32x160xi1>, vector<32x160xf32>
    %26 = tpu.iota {dimensions = array<i32: 0>} : vector<2x32xi32>
    %27 = tpu.iota {dimensions = array<i32: 1>} : vector<2x32xi32>
    %c16_i32_11 = arith.constant 16 : i32
    %28 = vector.broadcast %c16_i32_11 : i32 to vector<2x32xi32>
    %29 = arith.muli %26, %28 : vector<2x32xi32>
    %30 = arith.cmpi sge, %27, %29 : vector<2x32xi32>
    %c1_i32_12 = arith.constant 1 : i32
    %31 = vector.broadcast %c1_i32_12 : i32 to vector<2x32xi32>
    %32 = arith.addi %26, %31 : vector<2x32xi32>
    %c16_i32_13 = arith.constant 16 : i32
    %33 = vector.broadcast %c16_i32_13 : i32 to vector<2x32xi32>
    %34 = arith.muli %32, %33 : vector<2x32xi32>
    %35 = arith.cmpi slt, %27, %34 : vector<2x32xi32>
    %36 = arith.andi %30, %35 : vector<2x32xi1>
    %cst_14 = arith.constant 1.000000e+00 : f32
    %cst_15 = arith.constant 0.000000e+00 : f32
    %37 = vector.broadcast %cst_14 : f32 to vector<2x32xf32>
    %38 = vector.broadcast %cst_15 : f32 to vector<2x32xf32>
    %39 = arith.select %36, %37, %38 : vector<2x32xi1>, vector<2x32xf32>
    %40 = tpu.iota {dimensions = array<i32: 0>} : vector<160x10xi32>
    %41 = tpu.iota {dimensions = array<i32: 1>} : vector<160x10xi32>
    %42 = arith.cmpi eq, %40, %41 : vector<160x10xi32>
    %c10_i32_16 = arith.constant 10 : i32
    %43 = vector.broadcast %c10_i32_16 : i32 to vector<160x10xi32>
    %44 = arith.addi %43, %41 : vector<160x10xi32>
    %45 = arith.cmpi eq, %40, %44 : vector<160x10xi32>
    %46 = arith.ori %42, %45 : vector<160x10xi1>
    %c20_i32 = arith.constant 20 : i32
    %47 = vector.broadcast %c20_i32 : i32 to vector<160x10xi32>
    %48 = arith.addi %47, %41 : vector<160x10xi32>
    %49 = arith.cmpi eq, %40, %48 : vector<160x10xi32>
    %50 = arith.ori %46, %49 : vector<160x10xi1>
    %c30_i32 = arith.constant 30 : i32
    %51 = vector.broadcast %c30_i32 : i32 to vector<160x10xi32>
    %52 = arith.addi %51, %41 : vector<160x10xi32>
    %53 = arith.cmpi eq, %40, %52 : vector<160x10xi32>
    %54 = arith.ori %50, %53 : vector<160x10xi1>
    %c40_i32 = arith.constant 40 : i32
    %55 = vector.broadcast %c40_i32 : i32 to vector<160x10xi32>
    %56 = arith.addi %55, %41 : vector<160x10xi32>
    %57 = arith.cmpi eq, %40, %56 : vector<160x10xi32>
    %58 = arith.ori %54, %57 : vector<160x10xi1>
    %c50_i32 = arith.constant 50 : i32
    %59 = vector.broadcast %c50_i32 : i32 to vector<160x10xi32>
    %60 = arith.addi %59, %41 : vector<160x10xi32>
    %61 = arith.cmpi eq, %40, %60 : vector<160x10xi32>
    %62 = arith.ori %58, %61 : vector<160x10xi1>
    %c60_i32 = arith.constant 60 : i32
    %63 = vector.broadcast %c60_i32 : i32 to vector<160x10xi32>
    %64 = arith.addi %63, %41 : vector<160x10xi32>
    %65 = arith.cmpi eq, %40, %64 : vector<160x10xi32>
    %66 = arith.ori %62, %65 : vector<160x10xi1>
    %c70_i32 = arith.constant 70 : i32
    %67 = vector.broadcast %c70_i32 : i32 to vector<160x10xi32>
    %68 = arith.addi %67, %41 : vector<160x10xi32>
    %69 = arith.cmpi eq, %40, %68 : vector<160x10xi32>
    %70 = arith.ori %66, %69 : vector<160x10xi1>
    %c80_i32 = arith.constant 80 : i32
    %71 = vector.broadcast %c80_i32 : i32 to vector<160x10xi32>
    %72 = arith.addi %71, %41 : vector<160x10xi32>
    %73 = arith.cmpi eq, %40, %72 : vector<160x10xi32>
    %74 = arith.ori %70, %73 : vector<160x10xi1>
    %c90_i32 = arith.constant 90 : i32
    %75 = vector.broadcast %c90_i32 : i32 to vector<160x10xi32>
    %76 = arith.addi %75, %41 : vector<160x10xi32>
    %77 = arith.cmpi eq, %40, %76 : vector<160x10xi32>
    %78 = arith.ori %74, %77 : vector<160x10xi1>
    %c100_i32 = arith.constant 100 : i32
    %79 = vector.broadcast %c100_i32 : i32 to vector<160x10xi32>
    %80 = arith.addi %79, %41 : vector<160x10xi32>
    %81 = arith.cmpi eq, %40, %80 : vector<160x10xi32>
    %82 = arith.ori %78, %81 : vector<160x10xi1>
    %c110_i32 = arith.constant 110 : i32
    %83 = vector.broadcast %c110_i32 : i32 to vector<160x10xi32>
    %84 = arith.addi %83, %41 : vector<160x10xi32>
    %85 = arith.cmpi eq, %40, %84 : vector<160x10xi32>
    %86 = arith.ori %82, %85 : vector<160x10xi1>
    %c120_i32 = arith.constant 120 : i32
    %87 = vector.broadcast %c120_i32 : i32 to vector<160x10xi32>
    %88 = arith.addi %87, %41 : vector<160x10xi32>
    %89 = arith.cmpi eq, %40, %88 : vector<160x10xi32>
    %90 = arith.ori %86, %89 : vector<160x10xi1>
    %c130_i32 = arith.constant 130 : i32
    %91 = vector.broadcast %c130_i32 : i32 to vector<160x10xi32>
    %92 = arith.addi %91, %41 : vector<160x10xi32>
    %93 = arith.cmpi eq, %40, %92 : vector<160x10xi32>
    %94 = arith.ori %90, %93 : vector<160x10xi1>
    %c140_i32 = arith.constant 140 : i32
    %95 = vector.broadcast %c140_i32 : i32 to vector<160x10xi32>
    %96 = arith.addi %95, %41 : vector<160x10xi32>
    %97 = arith.cmpi eq, %40, %96 : vector<160x10xi32>
    %98 = arith.ori %94, %97 : vector<160x10xi1>
    %c150_i32 = arith.constant 150 : i32
    %99 = vector.broadcast %c150_i32 : i32 to vector<160x10xi32>
    %100 = arith.addi %99, %41 : vector<160x10xi32>
    %101 = arith.cmpi eq, %40, %100 : vector<160x10xi32>
    %102 = arith.ori %98, %101 : vector<160x10xi1>
    %cst_17 = arith.constant 1.000000e+00 : f32
    %cst_18 = arith.constant 0.000000e+00 : f32
    %103 = vector.broadcast %cst_17 : f32 to vector<160x10xf32>
    %104 = vector.broadcast %cst_18 : f32 to vector<160x10xf32>
    %105 = arith.select %102, %103, %104 : vector<160x10xi1>, vector<160x10xf32>
    %106 = arith.mulf %6, %25 : vector<32x160xf32>
    %cst_19 = arith.constant dense<0.000000e+00> : vector<2x160xf32>
    %107 = tpu.matmul %39, %106, %cst_19 {dimension_numbers = #tpu.dot_dimension_numbers<[1], [0], [0], [1], [0, 0, 1, 1], [], []>} : vector<2x32xf32>, vector<32x160xf32>, vector<2x160xf32> -> vector<2x160xf32>
    %cst_20 = arith.constant dense<0.000000e+00> : vector<2x10xf32>
    %108 = tpu.matmul %107, %105, %cst_20 {dimension_numbers = #tpu.dot_dimension_numbers<[1], [0], [0], [1], [0, 0, 1, 1], [], []>} : vector<2x160xf32>, vector<160x10xf32>, vector<2x10xf32> -> vector<2x10xf32>
    %c0_21 = arith.constant 0 : index
    %c0_22 = arith.constant 0 : index
    %109 = vector.load %arg3[%c0_21, %c0_22] : memref<1x10xf32, #tpu.memory_space<vmem>>, vector<1x10xf32>
    %110 = vector.broadcast %109 : vector<1x10xf32> to vector<2x10xf32>
    %111 = arith.addf %108, %110 : vector<2x10xf32>
    %c0_23 = arith.constant 0 : index
    %c0_24 = arith.constant 0 : index
    %112 = vector.load %arg4[%c0_23, %c0_24] : memref<2x10xf32, #tpu.memory_space<vmem>>, vector<2x10xf32>
    tpu.vector_store %arg4[%c0_23, %c0_24], %111 {strides = array<i32>} : memref<2x10xf32, #tpu.memory_space<vmem>>, vector<2x10xf32>,
    return
  }
}

</mosaic_0001>

<llo_original>
// kernel: cnn_forward.1
$region0: #{cnn_forward.1}
  #allocation0 [shape = 'u32[]', space=smem, size = 0x4, offset = 0x4, fixed_abs, tag = 'smem constant byte address 0x4 - core index']
  #allocation1 [shape = 'u32[144,128]{1,0:T(1,128)}', space=vmem, size = 0x12000, scoped, tag = 'internal scratch']
  %s0 = inlined_call_operand.vmem [shape: f32[74,256], index: 0, kind: input, shape index: {}]
  %s1 = inlined_call_operand.vmem [shape: f32[32,74], index: 1, kind: input, shape index: {}]
  %s2 = inlined_call_operand.vmem [shape: f32[256,160], index: 2, kind: input, shape index: {}]
  %s3 = inlined_call_operand.vmem [shape: f32[1,10], index: 3, kind: input, shape index: {}]
  %s4 = inlined_call_operand.hbm [shape: f32[2,10], index: 4, kind: output, shape index: {}]
  %s5 = sld [smem:[#allocation0]]
  $region26: #{cnn_forward.1} parent=0
    _
  %s7 = ssub.s32 1, %s5
  %s8 = scalar_select 0, %s7, %s5
  $region1: #{cnn_forward.1} parent=0
    #allocation2 [shape = 'u8[1024]{0}', space=vmem, size = 0x400, scoped, tag = 'output window, operand 0, single buffered']
    #allocation3 [shape = 's32[1]{0}', space=sflag, size = 0x4, scoped, tag = 'scoped memory for cnn_forward.1']
    %9 = vsyncpa [#allocation3], 0
    // Predicated region
    $region2: #{cnn_forward.1} parent=1 // pred_check
      _
    $region3: #{cnn_forward.1} parent=1 // pred_check_branch
      %11 = sbr.rel (0) target = $region5
    $region4: #{cnn_forward.1} parent=1 // pred_region
      _
    $region5: #{cnn_forward.1} parent=1 // pred_fallthru
      _
    // Predicated region
    $region6: #{cnn_forward.1} parent=1 // pred_check
      _
    $region7: #{cnn_forward.1} parent=1 // pred_check_branch
      %13 = sbr.rel (0) target = $region9
    $region8: #{cnn_forward.1} parent=1 // pred_region
      _
    $region9: #{cnn_forward.1} parent=1 // pred_fallthru
      _
    // Predicated region
    $region10: #{cnn_forward.1} parent=1 // pred_check
      _
    $region11: #{cnn_forward.1} parent=1 // pred_check_branch
      %15 = sbr.rel (0) target = $region13
    $region12: #{cnn_forward.1} parent=1 // pred_region
      _
    $region13: #{cnn_forward.1} parent=1 // pred_fallthru
      _
    // Predicated region
    $region14: #{cnn_forward.1} parent=1 // pred_check
      _
    $region15: #{cnn_forward.1} parent=1 // pred_check_branch
      %17 = sbr.rel (0) target = $region17
    $region16: #{cnn_forward.1} parent=1 // pred_region
      _
    $region17: #{cnn_forward.1} parent=1 // pred_fallthru
      _
    %v18 = vld [vmem:[%s1] sm:$0xff]
    %v19 = vld [vmem:[%s1 + $0x8] sm:$0xff]
    %v20 = vld [vmem:[%s1 + $0x10] sm:$0xff]
    %v21 = vld [vmem:[%s1 + $0x18] sm:$0xff]
    %v22 = vld [vmem:[%s0] sm:$0xff]
    %v23 = vld [vmem:[%s0 + $0x8] sm:$0xff]
    %v24 = vld [vmem:[%s0 + $0x10] sm:$0xff]
    %v25 = vld [vmem:[%s0 + $0x18] sm:$0xff]
    %v26 = vld [vmem:[%s0 + $0x20] sm:$0xff]
    %v27 = vld [vmem:[%s0 + $0x28] sm:$0xff]
    %v28 = vld [vmem:[%s0 + $0x30] sm:$0xff]
    %v29 = vld [vmem:[%s0 + $0x38] sm:$0xff]
    %v30 = vld [vmem:[%s0 + $0x40] sm:$0xff]
    %v31 = vld [vmem:[%s0 + $0x48] sm:$0xff]
    %v32 = vld [vmem:[%s0 + $0x50] sm:$0xff]
    %v33 = vld [vmem:[%s0 + $0x58] sm:$0xff]
    %v34 = vld [vmem:[%s0 + $0x60] sm:$0xff]
    %v35 = vld [vmem:[%s0 + $0x68] sm:$0xff]
    %v36 = vld [vmem:[%s0 + $0x70] sm:$0xff]
    %v37 = vld [vmem:[%s0 + $0x78] sm:$0xff]
    %v38 = vld [vmem:[%s0 + $0x80] sm:$0xff]
    %v39 = vld [vmem:[%s0 + $0x88] sm:$0xff]
    %v40 = vld [vmem:[%s0 + $0x90] sm:$0x3]
    %v41 = vld [vmem:[%s0 + $0x98] sm:$0x3]
    %vm42 = vcmask 605184
    %v44 = vsel %vm42, %v18, 0
    %v47 = vsel %vm42, %v19, 0
    %v50 = vsel %vm42, %v20, 0
    %v53 = vsel %vm42, %v21, 0
    %vm55 = vcmask 1041408
    %v57 = vsel %vm55, %v40, 0
    %v60 = vsel %vm55, %v41, 0
    %62 = vmatprep.subr.mxu0 %v23
    %63 = vmatpush1.msra.mxu0 %v22
    %64 = vmatprep.subr.mxu0 %v25
    %65 = vmatpush1.msra.mxu0 %v24
    %66 = vmatprep.subr.mxu0 %v27
    %67 = vmatpush1.msra.mxu0 %v26
    %68 = vmatprep.subr.mxu0 %v29
    %69 = vmatpush1.msra.mxu0 %v28
    %70 = vmatprep.subr.mxu0 %v31
    %71 = vmatpush1.msra.mxu0 %v30
    %72 = vmatprep.subr.mxu0 %v33
    %73 = vmatpush1.msra.mxu0 %v32
    %74 = vmatprep.subr.mxu0 %v35
    %75 = vmatpush1.msra.mxu0 %v34
    %76 = vmatprep.subr.mxu0 %v37
    %77 = vmatpush1.msra.mxu0 %v36
    %78 = vmatprep.subr.mxu0 %v39
    %79 = vmatpush1.msra.mxu0 %v38
    %80 = vmatprep.subr.mxu0 %v60
    %81 = vmatpush1.msra.mxu0 %v57
    %82 = vmatprep.subr.mxu0 0.0
    %83 = vmatpush1.msra.mxu0 0.0
    %84 = vmatprep.subr.mxu0 0.0
    %85 = vmatpush1.msra.mxu0 0.0
    %86 = vmatprep.subr.mxu0 0.0
    %87 = vmatpush1.msra.mxu0 0.0
    %88 = vmatprep.subr.mxu0 0.0
    %89 = vmatpush1.msra.mxu0 0.0
    %90 = vmatprep.subr.mxu0 0.0
    %91 = vmatpush1.msra.mxu0 0.0
    %92 = vmatprep.subr.mxu0 0.0
    %93 = vmatpush1.msra.mxu0 0.0
    %94 = vmatprep.subr.mxu0 0.0
    %95 = vmatpush1.msra.mxu0 0.0
    %96 = vmatprep.subr.mxu0 0.0
    %97 = vmatpush1.msra.mxu0 0.0
    %98 = vmatprep.subr.mxu0 0.0
    %99 = vmatpush1.msra.mxu0 0.0
    %100 = vmatprep.subr.mxu0 0.0
    %101 = vmatpush1.msra.mxu0 0.0
    %102 = vmatprep.subr.mxu0 0.0
    %103 = vmatpush1.msra.mxu0 0.0
    %104 = vmatprep.subr.mxu0 0.0
    %105 = vmatpush1.msra.mxu0 0.0
    %106 = vmatprep.subr.mxu0 0.0
    %107 = vmatpush1.msra.mxu0 0.0
    %108 = vmatprep.subr.mxu0 0.0
    %109 = vmatpush1.msra.mxu0 0.0
    %110 = vmatprep.subr.mxu0 0.0
    %111 = vmatpush1.msra.mxu0 0.0
    %112 = vmatprep.subr.mxu0 0.0
    %113 = vmatpush1.msra.mxu0 0.0
    %114 = vmatprep.subr.mxu0 0.0
    %115 = vmatpush1.msra.mxu0 0.0
    %116 = vmatprep.subr.mxu0 0.0
    %117 = vmatpush1.msra.mxu0 0.0
    %118 = vmatprep.subr.mxu0 0.0
    %119 = vmatpush1.msra.mxu0 0.0
    %120 = vmatprep.subr.mxu0 0.0
    %121 = vmatpush1.msra.mxu0 0.0
    %122 = vmatprep.subr.mxu0 0.0
    %123 = vmatpush1.msra.mxu0 0.0
    %124 = vmatprep.subr.mxu0 0.0
    %125 = vmatpush1.msra.mxu0 0.0
    %126 = vmatprep.mubr.f32.mxu0 0.0
    %127 = vmatmul.mubr.f32.gmra.mrb[0].mxu0 %v44
    %v128 = vpop.f32.mrb[0].mxu0
    %v129 = vadd.f32 0.0, %v128
    %v130 = vpop.f32.mrb[0].mxu0
    %v131 = vadd.f32 0.0, %v130
    %132 = vmatprep.mubr.f32.mxu0 0.0
    %133 = vmatmul.mubr.f32.gmra.mrb[0].mxu0 %v47
    %v134 = vpop.f32.mrb[0].mxu0
    %v135 = vadd.f32 0.0, %v134
    %v136 = vpop.f32.mrb[0].mxu0
    %v137 = vadd.f32 0.0, %v136
    %138 = vmatprep.mubr.f32.mxu0 0.0
    %139 = vmatmul.mubr.f32.gmra.mrb[0].mxu0 %v50
    %v140 = vpop.f32.mrb[0].mxu0
    %v141 = vadd.f32 0.0, %v140
    %v142 = vpop.f32.mrb[0].mxu0
    %v143 = vadd.f32 0.0, %v142
    %144 = vmatprep.mubr.f32.mxu0 0.0
    %145 = vmatmul.mubr.f32.gmra.mrb[0].mxu0 %v53
    %v146 = vpop.f32.mrb[0].mxu0
    %v147 = vadd.f32 0.0, %v146
    %v148 = vpop.f32.mrb[0].mxu0
    %v149 = vadd.f32 0.0, %v148
    %150 = vdwg.mxu0
    %v151 = vmax.f32 %v129, 0.0
    %v152 = vmax.f32 %v131, 0.0
    %v153 = vmax.f32 %v135, 0.0
    %v154 = vmax.f32 %v137, 0.0
    %v155 = vmax.f32 %v141, 0.0
    %v156 = vmax.f32 %v143, 0.0
    %v157 = vmax.f32 %v147, 0.0
    %v158 = vmax.f32 %v149, 0.0
    %v159 = vld [vmem:[%s2] sm:$0xff]
    %v160 = vld [vmem:[%s2 + $0x8] sm:$0xff]
    %v161 = vld [vmem:[%s2 + $0x10] sm:$0xff]
    %v162 = vld [vmem:[%s2 + $0x18] sm:$0xff]
    %v163 = vld [vmem:[%s2 + $0x20] sm:$0xff]
    %v164 = vld [vmem:[%s2 + $0x28] sm:$0xff]
    %v165 = vld [vmem:[%s2 + $0x30] sm:$0xff]
    %v166 = vld [vmem:[%s2 + $0x38] sm:$0xff]
    %v167 = vld [vmem:[%s2 + $0x40] sm:$0xff]
    %v168 = vld [vmem:[%s2 + $0x48] sm:$0xff]
    %v169 = vld [vmem:[%s2 + $0x50] sm:$0xff]
    %v170 = vld [vmem:[%s2 + $0x58] sm:$0xff]
    %v171 = vld [vmem:[%s2 + $0x60] sm:$0xff]
    %v172 = vld [vmem:[%s2 + $0x68] sm:$0xff]
    %v173 = vld [vmem:[%s2 + $0x70] sm:$0xff]
    %v174 = vld [vmem:[%s2 + $0x78] sm:$0xff]
    %v175 = vld [vmem:[%s2 + $0x80] sm:$0xff]
    %v176 = vld [vmem:[%s2 + $0x88] sm:$0xff]
    %v177 = vld [vmem:[%s2 + $0x90] sm:$0xff]
    %v178 = vld [vmem:[%s2 + $0x98] sm:$0xff]
    %v179 = vld [vmem:[%s2 + $0xa0] sm:$0xff]
    %v180 = vld [vmem:[%s2 + $0xa8] sm:$0xff]
    %v181 = vld [vmem:[%s2 + $0xb0] sm:$0xff]
    %v182 = vld [vmem:[%s2 + $0xb8] sm:$0xff]
    %v183 = vld [vmem:[%s2 + $0xc0] sm:$0xff]
    %v184 = vld [vmem:[%s2 + $0xc8] sm:$0xff]
    %v185 = vld [vmem:[%s2 + $0xd0] sm:$0xff]
    %v186 = vld [vmem:[%s2 + $0xd8] sm:$0xff]
    %v187 = vld [vmem:[%s2 + $0xe0] sm:$0xff]
    %v188 = vld [vmem:[%s2 + $0xe8] sm:$0xff]
    %v189 = vld [vmem:[%s2 + $0xf0] sm:$0xff]
    %v190 = vld [vmem:[%s2 + $0xf8] sm:$0xff]
    %v191 = vld [vmem:[%s2 + $0x100] sm:$0xff]
    %v192 = vld [vmem:[%s2 + $0x108] sm:$0xff]
    %v193 = vld [vmem:[%s2 + $0x110] sm:$0xff]
    %v194 = vld [vmem:[%s2 + $0x118] sm:$0xff]
    %v195 = vld [vmem:[%s2 + $0x120] sm:$0xff]
    %v196 = vld [vmem:[%s2 + $0x128] sm:$0xff]
    %v197 = vld [vmem:[%s2 + $0x130] sm:$0xff]
    %v198 = vld [vmem:[%s2 + $0x138] sm:$0xff]
    %v199 = vld [vmem:[%s2 + $0x140] sm:$0xff]
    %v200 = vld [vmem:[%s2 + $0x148] sm:$0xff]
    %v201 = vld [vmem:[%s2 + $0x150] sm:$0xff]
    %v202 = vld [vmem:[%s2 + $0x158] sm:$0xff]
    %v203 = vld [vmem:[%s2 + $0x160] sm:$0xff]
    %v204 = vld [vmem:[%s2 + $0x168] sm:$0xff]
    %v205 = vld [vmem:[%s2 + $0x170] sm:$0xff]
    %v206 = vld [vmem:[%s2 + $0x178] sm:$0xff]
    %v207 = vld [vmem:[%s2 + $0x180] sm:$0xff]
    %v208 = vld [vmem:[%s2 + $0x188] sm:$0xff]
    %v209 = vld [vmem:[%s2 + $0x190] sm:$0xff]
    %v210 = vld [vmem:[%s2 + $0x198] sm:$0xff]
    %v211 = vld [vmem:[%s2 + $0x1a0] sm:$0xff]
    %v212 = vld [vmem:[%s2 + $0x1a8] sm:$0xff]
    %v213 = vld [vmem:[%s2 + $0x1b0] sm:$0xff]
    %v214 = vld [vmem:[%s2 + $0x1b8] sm:$0xff]
    %v215 = vld [vmem:[%s2 + $0x1c0] sm:$0xff]
    %v216 = vld [vmem:[%s2 + $0x1c8] sm:$0xff]
    %v217 = vld [vmem:[%s2 + $0x1d0] sm:$0xff]
    %v218 = vld [vmem:[%s2 + $0x1d8] sm:$0xff]
    %v219 = vld [vmem:[%s2 + $0x1e0] sm:$0xff]
    %v220 = vld [vmem:[%s2 + $0x1e8] sm:$0xff]
    %v221 = vld [vmem:[%s2 + $0x1f0] sm:$0xff]
    %v222 = vld [vmem:[%s2 + $0x1f8] sm:$0xff]
    %223 = vmatprep.subr.mxu0 %v160
    %224 = vmatpush1.msra.mxu0 %v159
    %225 = vmatprep.subr.mxu0 %v162
    %226 = vmatpush1.msra.mxu0 %v161
    %227 = vmatprep.subr.mxu0 %v164
    %228 = vmatpush1.msra.mxu0 %v163
    %229 = vmatprep.subr.mxu0 %v166
    %230 = vmatpush1.msra.mxu0 %v165
    %231 = vmatprep.subr.mxu0 %v168
    %232 = vmatpush1.msra.mxu0 %v167
    %233 = vmatprep.subr.mxu0 %v170
    %234 = vmatpush1.msra.mxu0 %v169
    %235 = vmatprep.subr.mxu0 %v172
    %236 = vmatpush1.msra.mxu0 %v171
    %237 = vmatprep.subr.mxu0 %v174
    %238 = vmatpush1.msra.mxu0 %v173
    %239 = vmatprep.subr.mxu0 %v176
    %240 = vmatpush1.msra.mxu0 %v175
    %241 = vmatprep.subr.mxu0 %v178
    %242 = vmatpush1.msra.mxu0 %v177
    %243 = vmatprep.subr.mxu0 %v180
    %244 = vmatpush1.msra.mxu0 %v179
    %245 = vmatprep.subr.mxu0 %v182
    %246 = vmatpush1.msra.mxu0 %v181
    %247 = vmatprep.subr.mxu0 %v184
    %248 = vmatpush1.msra.mxu0 %v183
    %249 = vmatprep.subr.mxu0 %v186
    %250 = vmatpush1.msra.mxu0 %v185
    %251 = vmatprep.subr.mxu0 %v188
    %252 = vmatpush1.msra.mxu0 %v187
    %253 = vmatprep.subr.mxu0 %v190
    %254 = vmatpush1.msra.mxu0 %v189
    %255 = vmatprep.subr.mxu0 %v192
    %256 = vmatpush1.msra.mxu0 %v191
    %257 = vmatprep.subr.mxu0 %v194
    %258 = vmatpush1.msra.mxu0 %v193
    %259 = vmatprep.subr.mxu0 %v196
    %260 = vmatpush1.msra.mxu0 %v195
    %261 = vmatprep.subr.mxu0 %v198
    %262 = vmatpush1.msra.mxu0 %v197
    %263 = vmatprep.subr.mxu0 %v200
    %264 = vmatpush1.msra.mxu0 %v199
    %265 = vmatprep.subr.mxu0 %v202
    %266 = vmatpush1.msra.mxu0 %v201
    %267 = vmatprep.subr.mxu0 %v204
    %268 = vmatpush1.msra.mxu0 %v203
    %269 = vmatprep.subr.mxu0 %v206
    %270 = vmatpush1.msra.mxu0 %v205
    %271 = vmatprep.subr.mxu0 %v208
    %272 = vmatpush1.msra.mxu0 %v207
    %273 = vmatprep.subr.mxu0 %v210
    %274 = vmatpush1.msra.mxu0 %v209
    %275 = vmatprep.subr.mxu0 %v212
    %276 = vmatpush1.msra.mxu0 %v211
    %277 = vmatprep.subr.mxu0 %v214
    %278 = vmatpush1.msra.mxu0 %v213
    %279 = vmatprep.subr.mxu0 %v216
    %280 = vmatpush1.msra.mxu0 %v215
    %281 = vmatprep.subr.mxu0 %v218
    %282 = vmatpush1.msra.mxu0 %v217
    %283 = vmatprep.subr.mxu0 %v220
    %284 = vmatpush1.msra.mxu0 %v219
    %285 = vmatprep.subr.mxu0 %v222
    %286 = vmatpush1.msra.mxu0 %v221
    %287 = vmatprep.mubr.f32.mxu0 %v152
    %288 = vmatmul.mubr.f32.gmra.mrb[0].mxu0 %v151
    %v289 = vpop.f32.mrb[0].mxu0
    %v290 = vadd.f32 0.0, %v289
    %v291 = vpop.f32.mrb[0].mxu0
    %v292 = vadd.f32 0.0, %v291
    %293 = vmatprep.mubr.f32.mxu0 %v154
    %294 = vmatmul.mubr.f32.gmra.mrb[0].mxu0 %v153
    %v295 = vpop.f32.mrb[0].mxu0
    %v296 = vadd.f32 0.0, %v295
    %v297 = vpop.f32.mrb[0].mxu0
    %v298 = vadd.f32 0.0, %v297
    %299 = vmatprep.mubr.f32.mxu0 %v156
    %300 = vmatmul.mubr.f32.gmra.mrb[0].mxu0 %v155
    %v301 = vpop.f32.mrb[0].mxu0
    %v302 = vadd.f32 0.0, %v301
    %v303 = vpop.f32.mrb[0].mxu0
    %v304 = vadd.f32 0.0, %v303
    %305 = vmatprep.mubr.f32.mxu0 %v158
    %306 = vmatmul.mubr.f32.gmra.mrb[0].mxu0 %v157
    %v307 = vpop.f32.mrb[0].mxu0
    %v308 = vadd.f32 0.0, %v307
    %v309 = vpop.f32.mrb[0].mxu0
    %v310 = vadd.f32 0.0, %v309
    %311 = vdwg.mxu0
    %v312 = vlaneseq
    %v313 = vshrl.u32 %v312, 7
    %v314 = vadd.s32 %v313, 8
    %v315 = vadd.s32 %v313, 16
    %v316 = vadd.s32 %v313, 24
    %v317 = vlaneseq
    %v318 = vand.u32 %v317, 127
    %v319 = vadd.s32 %v318, 128
    %vm320 = vcmp.ge.s32.totalorder %v313, 16
    %vm321 = vcmp.ge.s32.totalorder %v314, 16
    %vm322 = vcmp.ge.s32.totalorder %v315, 16
    %vm323 = vcmp.ge.s32.totalorder %v316, 16
    %v324 = vsub.s32 %v313, 16
    %v325 = vsub.s32 %v314, 16
    %v326 = vsub.s32 %v316, 16
    %v327 = vsel %vm320, %v324, %v313
    %v328 = vsel %vm321, %v325, %v314
    %v329 = vsel %vm322, %v313, %v315
    %v330 = vsel %vm323, %v326, %v316
    %v331 = vmul.u32 %v327, 10
    %v332 = vmul.u32 %v328, 10
    %v333 = vmul.u32 %v329, 10
    %v334 = vmul.u32 %v330, 10
    %vm335 = vcmp.ge.s32.totalorder %v318, %v331
    %vm336 = vcmp.ge.s32.totalorder %v319, %v331
    %vm337 = vcmp.ge.s32.totalorder %v318, %v332
    %vm338 = vcmp.ge.s32.totalorder %v319, %v332
    %vm339 = vcmp.ge.s32.totalorder %v318, %v333
    %vm340 = vcmp.ge.s32.totalorder %v319, %v333
    %vm341 = vcmp.ge.s32.totalorder %v318, %v334
    %vm342 = vcmp.ge.s32.totalorder %v319, %v334
    %v343 = vadd.s32 %v327, 1
    %v344 = vadd.s32 %v328, 1
    %v345 = vadd.s32 %v329, 1
    %v346 = vadd.s32 %v330, 1
    %v347 = vmul.u32 %v343, 10
    %v348 = vmul.u32 %v344, 10
    %v349 = vmul.u32 %v345, 10
    %v350 = vmul.u32 %v346, 10
    %vm351 = vcmp.lt.s32.totalorder %v318, %v347
    %vm352 = vcmp.lt.s32.totalorder %v319, %v347
    %vm353 = vcmp.lt.s32.totalorder %v318, %v348
    %vm354 = vcmp.lt.s32.totalorder %v319, %v348
    %vm355 = vcmp.lt.s32.totalorder %v318, %v349
    %vm356 = vcmp.lt.s32.totalorder %v319, %v349
    %vm357 = vcmp.lt.s32.totalorder %v318, %v350
    %vm358 = vcmp.lt.s32.totalorder %v319, %v350
    %vm359 = vmand %vm335, %vm351
    %vm360 = vmand %vm336, %vm352
    %vm361 = vmand %vm337, %vm353
    %vm362 = vmand %vm338, %vm354
    %vm363 = vmand %vm339, %vm355
    %vm364 = vmand %vm340, %vm356
    %vm365 = vmand %vm341, %vm357
    %vm366 = vmand %vm342, %vm358
    %v367 = vsel %vm359, 1.0, 0.0
    %v368 = vsel %vm360, 1.0, 0.0
    %v369 = vsel %vm361, 1.0, 0.0
    %v370 = vsel %vm362, 1.0, 0.0
    %v371 = vsel %vm363, 1.0, 0.0
    %v372 = vsel %vm364, 1.0, 0.0
    %v373 = vsel %vm365, 1.0, 0.0
    %v374 = vsel %vm366, 1.0, 0.0
    %v375 = vmul.u32 %v313, 16
    %vm376 = vcmp.ge.s32.totalorder %v318, %v375
    %v377 = vadd.s32 %v313, 1
    %v378 = vmul.u32 %v377, 16
    %vm379 = vcmp.lt.s32.totalorder %v318, %v378
    %vm380 = vmand %vm376, %vm379
    %v381 = vsel %vm380, 1.0, 0.0
    %v382 = vadd.s32 %v313, 32
    %v383 = vadd.s32 %v313, 40
    %v384 = vadd.s32 %v313, 48
    %v385 = vadd.s32 %v313, 56
    %v386 = vadd.s32 %v313, 64
    %v387 = vadd.s32 %v313, 72
    %v388 = vadd.s32 %v313, 80
    %v389 = vadd.s32 %v313, 88
    %v390 = vadd.s32 %v313, 96
    %v391 = vadd.s32 %v313, 104
    %v392 = vadd.s32 %v313, 112
    %v393 = vadd.s32 %v313, 120
    %v394 = vadd.s32 %v313, 128
    %v395 = vadd.s32 %v313, 136
    %v396 = vadd.s32 %v313, 144
    %v397 = vadd.s32 %v313, 152
    %vm398 = vcmp.eq.s32.totalorder %v313, %v318
    %vm399 = vcmp.eq.s32.totalorder %v314, %v318
    %vm400 = vcmp.eq.s32.totalorder %v315, %v318
    %vm401 = vcmp.eq.s32.totalorder %v316, %v318
    %vm402 = vcmp.eq.s32.totalorder %v382, %v318
    %vm403 = vcmp.eq.s32.totalorder %v383, %v318
    %vm404 = vcmp.eq.s32.totalorder %v384, %v318
    %vm405 = vcmp.eq.s32.totalorder %v385, %v318
    %vm406 = vcmp.eq.s32.totalorder %v386, %v318
    %vm407 = vcmp.eq.s32.totalorder %v387, %v318
    %vm408 = vcmp.eq.s32.totalorder %v388, %v318
    %vm409 = vcmp.eq.s32.totalorder %v389, %v318
    %vm410 = vcmp.eq.s32.totalorder %v390, %v318
    %vm411 = vcmp.eq.s32.totalorder %v391, %v318
    %vm412 = vcmp.eq.s32.totalorder %v392, %v318
    %vm413 = vcmp.eq.s32.totalorder %v393, %v318
    %vm414 = vcmp.eq.s32.totalorder %v394, %v318
    %vm415 = vcmp.eq.s32.totalorder %v395, %v318
    %vm416 = vcmp.eq.s32.totalorder %v396, %v318
    %vm417 = vcmp.eq.s32.totalorder %v397, %v318
    %v418 = vadd.s32 %v318, 10
    %vm419 = vcmp.eq.s32.totalorder %v313, %v418
    %vm420 = vcmp.eq.s32.totalorder %v314, %v418
    %vm421 = vcmp.eq.s32.totalorder %v315, %v418
    %vm422 = vcmp.eq.s32.totalorder %v316, %v418
    %vm423 = vcmp.eq.s32.totalorder %v382, %v418
    %vm424 = vcmp.eq.s32.totalorder %v383, %v418
    %vm425 = vcmp.eq.s32.totalorder %v384, %v418
    %vm426 = vcmp.eq.s32.totalorder %v385, %v418
    %vm427 = vcmp.eq.s32.totalorder %v386, %v418
    %vm428 = vcmp.eq.s32.totalorder %v387, %v418
    %vm429 = vcmp.eq.s32.totalorder %v388, %v418
    %vm430 = vcmp.eq.s32.totalorder %v389, %v418
    %vm431 = vcmp.eq.s32.totalorder %v390, %v418
    %vm432 = vcmp.eq.s32.totalorder %v391, %v418
    %vm433 = vcmp.eq.s32.totalorder %v392, %v418
    %vm434 = vcmp.eq.s32.totalorder %v393, %v418
    %vm435 = vcmp.eq.s32.totalorder %v394, %v418
    %vm436 = vcmp.eq.s32.totalorder %v395, %v418
    %vm437 = vcmp.eq.s32.totalorder %v396, %v418
    %vm438 = vcmp.eq.s32.totalorder %v397, %v418
    %vm439 = vmor %vm398, %vm419
    %vm440 = vmor %vm399, %vm420
    %vm441 = vmor %vm400, %vm421
    %vm442 = vmor %vm401, %vm422
    %vm443 = vmor %vm402, %vm423
    %vm444 = vmor %vm403, %vm424
    %vm445 = vmor %vm404, %vm425
    %vm446 = vmor %vm405, %vm426
    %vm447 = vmor %vm406, %vm427
    %vm448 = vmor %vm407, %vm428
    %vm449 = vmor %vm408, %vm429
    %vm450 = vmor %vm409, %vm430
    %vm451 = vmor %vm410, %vm431
    %vm452 = vmor %vm411, %vm432
    %vm453 = vmor %vm412, %vm433
    %vm454 = vmor %vm413, %vm434
    %vm455 = vmor %vm414, %vm435
    %vm456 = vmor %vm415, %vm436
    %vm457 = vmor %vm416, %vm437
    %vm458 = vmor %vm417, %vm438
    %v459 = vadd.s32 %v318, 20
    %vm460 = vcmp.eq.s32.totalorder %v313, %v459
    %vm461 = vcmp.eq.s32.totalorder %v314, %v459
    %vm462 = vcmp.eq.s32.totalorder %v315, %v459
    %vm463 = vcmp.eq.s32.totalorder %v316, %v459
    %vm464 = vcmp.eq.s32.totalorder %v382, %v459
    %vm465 = vcmp.eq.s32.totalorder %v383, %v459
    %vm466 = vcmp.eq.s32.totalorder %v384, %v459
    %vm467 = vcmp.eq.s32.totalorder %v385, %v459
    %vm468 = vcmp.eq.s32.totalorder %v386, %v459
    %vm469 = vcmp.eq.s32.totalorder %v387, %v459
    %vm470 = vcmp.eq.s32.totalorder %v388, %v459
    %vm471 = vcmp.eq.s32.totalorder %v389, %v459
    %vm472 = vcmp.eq.s32.totalorder %v390, %v459
    %vm473 = vcmp.eq.s32.totalorder %v391, %v459
    %vm474 = vcmp.eq.s32.totalorder %v392, %v459
    %vm475 = vcmp.eq.s32.totalorder %v393, %v459
    %vm476 = vcmp.eq.s32.totalorder %v394, %v459
    %vm477 = vcmp.eq.s32.totalorder %v395, %v459
    %vm478 = vcmp.eq.s32.totalorder %v396, %v459
    %vm479 = vcmp.eq.s32.totalorder %v397, %v459
    %vm480 = vmor %vm439, %vm460
    %vm481 = vmor %vm440, %vm461
    %vm482 = vmor %vm441, %vm462
    %vm483 = vmor %vm442, %vm463
    %vm484 = vmor %vm443, %vm464
    %vm485 = vmor %vm444, %vm465
    %vm486 = vmor %vm445, %vm466
    %vm487 = vmor %vm446, %vm467
    %vm488 = vmor %vm447, %vm468
    %vm489 = vmor %vm448, %vm469
    %vm490 = vmor %vm449, %vm470
    %vm491 = vmor %vm450, %vm471
    %vm492 = vmor %vm451, %vm472
    %vm493 = vmor %vm452, %vm473
    %vm494 = vmor %vm453, %vm474
    %vm495 = vmor %vm454, %vm475
    %vm496 = vmor %vm455, %vm476
    %vm497 = vmor %vm456, %vm477
    %vm498 = vmor %vm457, %vm478
    %vm499 = vmor %vm458, %vm479
    %v500 = vadd.s32 %v318, 30
    %vm501 = vcmp.eq.s32.totalorder %v313, %v500
    %vm502 = vcmp.eq.s32.totalorder %v314, %v500
    %vm503 = vcmp.eq.s32.totalorder %v315, %v500
    %vm504 = vcmp.eq.s32.totalorder %v316, %v500
    %vm505 = vcmp.eq.s32.totalorder %v382, %v500
    %vm506 = vcmp.eq.s32.totalorder %v383, %v500
    %vm507 = vcmp.eq.s32.totalorder %v384, %v500
    %vm508 = vcmp.eq.s32.totalorder %v385, %v500
    %vm509 = vcmp.eq.s32.totalorder %v386, %v500
    %vm510 = vcmp.eq.s32.totalorder %v387, %v500
    %vm511 = vcmp.eq.s32.totalorder %v388, %v500
    %vm512 = vcmp.eq.s32.totalorder %v389, %v500
    %vm513 = vcmp.eq.s32.totalorder %v390, %v500
    %vm514 = vcmp.eq.s32.totalorder %v391, %v500
    %vm515 = vcmp.eq.s32.totalorder %v392, %v500
    %vm516 = vcmp.eq.s32.totalorder %v393, %v500
    %vm517 = vcmp.eq.s32.totalorder %v394, %v500
    %vm518 = vcmp.eq.s32.totalorder %v395, %v500
    %vm519 = vcmp.eq.s32.totalorder %v396, %v500
    %vm520 = vcmp.eq.s32.totalorder %v397, %v500
    %vm521 = vmor %vm480, %vm501
    %vm522 = vmor %vm481, %vm502
    %vm523 = vmor %vm482, %vm503
    %vm524 = vmor %vm483, %vm504
    %vm525 = vmor %vm484, %vm505
    %vm526 = vmor %vm485, %vm506
    %vm527 = vmor %vm486, %vm507
    %vm528 = vmor %vm487, %vm508
    %vm529 = vmor %vm488, %vm509
    %vm530 = vmor %vm489, %vm510
    %vm531 = vmor %vm490, %vm511
    %vm532 = vmor %vm491, %vm512
    %vm533 = vmor %vm492, %vm513
    %vm534 = vmor %vm493, %vm514
    %vm535 = vmor %vm494, %vm515
    %vm536 = vmor %vm495, %vm516
    %vm537 = vmor %vm496, %vm517
    %vm538 = vmor %vm497, %vm518
    %vm539 = vmor %vm498, %vm519
    %vm540 = vmor %vm499, %vm520
    %v541 = vadd.s32 %v318, 40
    %vm542 = vcmp.eq.s32.totalorder %v313, %v541
    %vm543 = vcmp.eq.s32.totalorder %v314, %v541
    %vm544 = vcmp.eq.s32.totalorder %v315, %v541
    %vm545 = vcmp.eq.s32.totalorder %v316, %v541
    %vm546 = vcmp.eq.s32.totalorder %v382, %v541
    %vm547 = vcmp.eq.s32.totalorder %v383, %v541
    %vm548 = vcmp.eq.s32.totalorder %v384, %v541
    %vm549 = vcmp.eq.s32.totalorder %v385, %v541
    %vm550 = vcmp.eq.s32.totalorder %v386, %v541
    %vm551 = vcmp.eq.s32.totalorder %v387, %v541
    %vm552 = vcmp.eq.s32.totalorder %v388, %v541
    %vm553 = vcmp.eq.s32.totalorder %v389, %v541
    %vm554 = vcmp.eq.s32.totalorder %v390, %v541
    %vm555 = vcmp.eq.s32.totalorder %v391, %v541
    %vm556 = vcmp.eq.s32.totalorder %v392, %v541
    %vm557 = vcmp.eq.s32.totalorder %v393, %v541
    %vm558 = vcmp.eq.s32.totalorder %v394, %v541
    %vm559 = vcmp.eq.s32.totalorder %v395, %v541
    %vm560 = vcmp.eq.s32.totalorder %v396, %v541
    %vm561 = vcmp.eq.s32.totalorder %v397, %v541
    %vm562 = vmor %vm521, %vm542
    %vm563 = vmor %vm522, %vm543
    %vm564 = vmor %vm523, %vm544
    %vm565 = vmor %vm524, %vm545
    %vm566 = vmor %vm525, %vm546
    %vm567 = vmor %vm526, %vm547
    %vm568 = vmor %vm527, %vm548
    %vm569 = vmor %vm528, %vm549
    %vm570 = vmor %vm529, %vm550
    %vm571 = vmor %vm530, %vm551
    %vm572 = vmor %vm531, %vm552
    %vm573 = vmor %vm532, %vm553
    %vm574 = vmor %vm533, %vm554
    %vm575 = vmor %vm534, %vm555
    %vm576 = vmor %vm535, %vm556
    %vm577 = vmor %vm536, %vm557
    %vm578 = vmor %vm537, %vm558
    %vm579 = vmor %vm538, %vm559
    %vm580 = vmor %vm539, %vm560
    %vm581 = vmor %vm540, %vm561
    %v582 = vadd.s32 %v318, 50
    %vm583 = vcmp.eq.s32.totalorder %v313, %v582
    %vm584 = vcmp.eq.s32.totalorder %v314, %v582
    %vm585 = vcmp.eq.s32.totalorder %v315, %v582
    %vm586 = vcmp.eq.s32.totalorder %v316, %v582
    %vm587 = vcmp.eq.s32.totalorder %v382, %v582
    %vm588 = vcmp.eq.s32.totalorder %v383, %v582
    %vm589 = vcmp.eq.s32.totalorder %v384, %v582
    %vm590 = vcmp.eq.s32.totalorder %v385, %v582
    %vm591 = vcmp.eq.s32.totalorder %v386, %v582
    %vm592 = vcmp.eq.s32.totalorder %v387, %v582
    %vm593 = vcmp.eq.s32.totalorder %v388, %v582
    %vm594 = vcmp.eq.s32.totalorder %v389, %v582
    %vm595 = vcmp.eq.s32.totalorder %v390, %v582
    %vm596 = vcmp.eq.s32.totalorder %v391, %v582
    %vm597 = vcmp.eq.s32.totalorder %v392, %v582
    %vm598 = vcmp.eq.s32.totalorder %v393, %v582
    %vm599 = vcmp.eq.s32.totalorder %v394, %v582
    %vm600 = vcmp.eq.s32.totalorder %v395, %v582
    %vm601 = vcmp.eq.s32.totalorder %v396, %v582
    %vm602 = vcmp.eq.s32.totalorder %v397, %v582
    %vm603 = vmor %vm562, %vm583
    %vm604 = vmor %vm563, %vm584
    %vm605 = vmor %vm564, %vm585
    %vm606 = vmor %vm565, %vm586
    %vm607 = vmor %vm566, %vm587
    %vm608 = vmor %vm567, %vm588
    %vm609 = vmor %vm568, %vm589
    %vm610 = vmor %vm569, %vm590
    %vm611 = vmor %vm570, %vm591
    %vm612 = vmor %vm571, %vm592
    %vm613 = vmor %vm572, %vm593
    %vm614 = vmor %vm573, %vm594
    %vm615 = vmor %vm574, %vm595
    %vm616 = vmor %vm575, %vm596
    %vm617 = vmor %vm576, %vm597
    %vm618 = vmor %vm577, %vm598
    %vm619 = vmor %vm578, %vm599
    %vm620 = vmor %vm579, %vm600
    %vm621 = vmor %vm580, %vm601
    %vm622 = vmor %vm581, %vm602
    %v623 = vadd.s32 %v318, 60
    %vm624 = vcmp.eq.s32.totalorder %v313, %v623
    %vm625 = vcmp.eq.s32.totalorder %v314, %v623
    %vm626 = vcmp.eq.s32.totalorder %v315, %v623
    %vm627 = vcmp.eq.s32.totalorder %v316, %v623
    %vm628 = vcmp.eq.s32.totalorder %v382, %v623
    %vm629 = vcmp.eq.s32.totalorder %v383, %v623
    %vm630 = vcmp.eq.s32.totalorder %v384, %v623
    %vm631 = vcmp.eq.s32.totalorder %v385, %v623
    %vm632 = vcmp.eq.s32.totalorder %v386, %v623
    %vm633 = vcmp.eq.s32.totalorder %v387, %v623
    %vm634 = vcmp.eq.s32.totalorder %v388, %v623
    %vm635 = vcmp.eq.s32.totalorder %v389, %v623
    %vm636 = vcmp.eq.s32.totalorder %v390, %v623
    %vm637 = vcmp.eq.s32.totalorder %v391, %v623
    %vm638 = vcmp.eq.s32.totalorder %v392, %v623
    %vm639 = vcmp.eq.s32.totalorder %v393, %v623
    %vm640 = vcmp.eq.s32.totalorder %v394, %v623
    %vm641 = vcmp.eq.s32.totalorder %v395, %v623
    %vm642 = vcmp.eq.s32.totalorder %v396, %v623
    %vm643 = vcmp.eq.s32.totalorder %v397, %v623
    %vm644 = vmor %vm603, %vm624
    %vm645 = vmor %vm604, %vm625
    %vm646 = vmor %vm605, %vm626
    %vm647 = vmor %vm606, %vm627
    %vm648 = vmor %vm607, %vm628
    %vm649 = vmor %vm608, %vm629
    %vm650 = vmor %vm609, %vm630
    %vm651 = vmor %vm610, %vm631
    %vm652 = vmor %vm611, %vm632
    %vm653 = vmor %vm612, %vm633
    %vm654 = vmor %vm613, %vm634
    %vm655 = vmor %vm614, %vm635
    %vm656 = vmor %vm615, %vm636
    %vm657 = vmor %vm616, %vm637
    %vm658 = vmor %vm617, %vm638
    %vm659 = vmor %vm618, %vm639
    %vm660 = vmor %vm619, %vm640
    %vm661 = vmor %vm620, %vm641
    %vm662 = vmor %vm621, %vm642
    %vm663 = vmor %vm622, %vm643
    %v664 = vadd.s32 %v318, 70
    %vm665 = vcmp.eq.s32.totalorder %v313, %v664
    %vm666 = vcmp.eq.s32.totalorder %v314, %v664
    %vm667 = vcmp.eq.s32.totalorder %v315, %v664
    %vm668 = vcmp.eq.s32.totalorder %v316, %v664
    %vm669 = vcmp.eq.s32.totalorder %v382, %v664
    %vm670 = vcmp.eq.s32.totalorder %v383, %v664
    %vm671 = vcmp.eq.s32.totalorder %v384, %v664
    %vm672 = vcmp.eq.s32.totalorder %v385, %v664
    %vm673 = vcmp.eq.s32.totalorder %v386, %v664
    %vm674 = vcmp.eq.s32.totalorder %v387, %v664
    %vm675 = vcmp.eq.s32.totalorder %v388, %v664
    %vm676 = vcmp.eq.s32.totalorder %v389, %v664
    %vm677 = vcmp.eq.s32.totalorder %v390, %v664
    %vm678 = vcmp.eq.s32.totalorder %v391, %v664
    %vm679 = vcmp.eq.s32.totalorder %v392, %v664
    %vm680 = vcmp.eq.s32.totalorder %v393, %v664
    %vm681 = vcmp.eq.s32.totalorder %v394, %v664
    %vm682 = vcmp.eq.s32.totalorder %v395, %v664
    %vm683 = vcmp.eq.s32.totalorder %v396, %v664
    %vm684 = vcmp.eq.s32.totalorder %v397, %v664
    %vm685 = vmor %vm644, %vm665
    %vm686 = vmor %vm645, %vm666
    %vm687 = vmor %vm646, %vm667
    %vm688 = vmor %vm647, %vm668
    %vm689 = vmor %vm648, %vm669
    %vm690 = vmor %vm649, %vm670
    %vm691 = vmor %vm650, %vm671
    %vm692 = vmor %vm651, %vm672
    %vm693 = vmor %vm652, %vm673
    %vm694 = vmor %vm653, %vm674
    %vm695 = vmor %vm654, %vm675
    %vm696 = vmor %vm655, %vm676
    %vm697 = vmor %vm656, %vm677
    %vm698 = vmor %vm657, %vm678
    %vm699 = vmor %vm658, %vm679
    %vm700 = vmor %vm659, %vm680
    %vm701 = vmor %vm660, %vm681
    %vm702 = vmor %vm661, %vm682
    %vm703 = vmor %vm662, %vm683
    %vm704 = vmor %vm663, %vm684
    %v705 = vadd.s32 %v318, 80
    %vm706 = vcmp.eq.s32.totalorder %v313, %v705
    %vm707 = vcmp.eq.s32.totalorder %v314, %v705
    %vm708 = vcmp.eq.s32.totalorder %v315, %v705
    %vm709 = vcmp.eq.s32.totalorder %v316, %v705
    %vm710 = vcmp.eq.s32.totalorder %v382, %v705
    %vm711 = vcmp.eq.s32.totalorder %v383, %v705
    %vm712 = vcmp.eq.s32.totalorder %v384, %v705
    %vm713 = vcmp.eq.s32.totalorder %v385, %v705
    %vm714 = vcmp.eq.s32.totalorder %v386, %v705
    %vm715 = vcmp.eq.s32.totalorder %v387, %v705
    %vm716 = vcmp.eq.s32.totalorder %v388, %v705
    %vm717 = vcmp.eq.s32.totalorder %v389, %v705
    %vm718 = vcmp.eq.s32.totalorder %v390, %v705
    %vm719 = vcmp.eq.s32.totalorder %v391, %v705
    %vm720 = vcmp.eq.s32.totalorder %v392, %v705
    %vm721 = vcmp.eq.s32.totalorder %v393, %v705
    %vm722 = vcmp.eq.s32.totalorder %v394, %v705
    %vm723 = vcmp.eq.s32.totalorder %v395, %v705
    %vm724 = vcmp.eq.s32.totalorder %v396, %v705
    %vm725 = vcmp.eq.s32.totalorder %v397, %v705
    %vm726 = vmor %vm685, %vm706
    %vm727 = vmor %vm686, %vm707
    %vm728 = vmor %vm687, %vm708
    %vm729 = vmor %vm688, %vm709
    %vm730 = vmor %vm689, %vm710
    %vm731 = vmor %vm690, %vm711
    %vm732 = vmor %vm691, %vm712
    %vm733 = vmor %vm692, %vm713
    %vm734 = vmor %vm693, %vm714
    %vm735 = vmor %vm694, %vm715
    %vm736 = vmor %vm695, %vm716
    %vm737 = vmor %vm696, %vm717
    %vm738 = vmor %vm697, %vm718
    %vm739 = vmor %vm698, %vm719
    %vm740 = vmor %vm699, %vm720
    %vm741 = vmor %vm700, %vm721
    %vm742 = vmor %vm701, %vm722
    %vm743 = vmor %vm702, %vm723
    %vm744 = vmor %vm703, %vm724
    %vm745 = vmor %vm704, %vm725
    %v746 = vadd.s32 %v318, 90
    %vm747 = vcmp.eq.s32.totalorder %v313, %v746
    %vm748 = vcmp.eq.s32.totalorder %v314, %v746
    %vm749 = vcmp.eq.s32.totalorder %v315, %v746
    %vm750 = vcmp.eq.s32.totalorder %v316, %v746
    %vm751 = vcmp.eq.s32.totalorder %v382, %v746
    %vm752 = vcmp.eq.s32.totalorder %v383, %v746
    %vm753 = vcmp.eq.s32.totalorder %v384, %v746
    %vm754 = vcmp.eq.s32.totalorder %v385, %v746
    %vm755 = vcmp.eq.s32.totalorder %v386, %v746
    %vm756 = vcmp.eq.s32.totalorder %v387, %v746
    %vm757 = vcmp.eq.s32.totalorder %v388, %v746
    %vm758 = vcmp.eq.s32.totalorder %v389, %v746
    %vm759 = vcmp.eq.s32.totalorder %v390, %v746
    %vm760 = vcmp.eq.s32.totalorder %v391, %v746
    %vm761 = vcmp.eq.s32.totalorder %v392, %v746
    %vm762 = vcmp.eq.s32.totalorder %v393, %v746
    %vm763 = vcmp.eq.s32.totalorder %v394, %v746
    %vm764 = vcmp.eq.s32.totalorder %v395, %v746
    %vm765 = vcmp.eq.s32.totalorder %v396, %v746
    %vm766 = vcmp.eq.s32.totalorder %v397, %v746
    %vm767 = vmor %vm726, %vm747
    %vm768 = vmor %vm727, %vm748
    %vm769 = vmor %vm728, %vm749
    %vm770 = vmor %vm729, %vm750
    %vm771 = vmor %vm730, %vm751
    %vm772 = vmor %vm731, %vm752
    %vm773 = vmor %vm732, %vm753
    %vm774 = vmor %vm733, %vm754
    %vm775 = vmor %vm734, %vm755
    %vm776 = vmor %vm735, %vm756
    %vm777 = vmor %vm736, %vm757
    %vm778 = vmor %vm737, %vm758
    %vm779 = vmor %vm738, %vm759
    %vm780 = vmor %vm739, %vm760
    %vm781 = vmor %vm740, %vm761
    %vm782 = vmor %vm741, %vm762
    %vm783 = vmor %vm742, %vm763
    %vm784 = vmor %vm743, %vm764
    %vm785 = vmor %vm744, %vm765
    %vm786 = vmor %vm745, %vm766
    %v787 = vadd.s32 %v318, 100
    %vm788 = vcmp.eq.s32.totalorder %v313, %v787
    %vm789 = vcmp.eq.s32.totalorder %v314, %v787
    %vm790 = vcmp.eq.s32.totalorder %v315, %v787
    %vm791 = vcmp.eq.s32.totalorder %v316, %v787
    %vm792 = vcmp.eq.s32.totalorder %v382, %v787
    %vm793 = vcmp.eq.s32.totalorder %v383, %v787
    %vm794 = vcmp.eq.s32.totalorder %v384, %v787
    %vm795 = vcmp.eq.s32.totalorder %v385, %v787
    %vm796 = vcmp.eq.s32.totalorder %v386, %v787
    %vm797 = vcmp.eq.s32.totalorder %v387, %v787
    %vm798 = vcmp.eq.s32.totalorder %v388, %v787
    %vm799 = vcmp.eq.s32.totalorder %v389, %v787
    %vm800 = vcmp.eq.s32.totalorder %v390, %v787
    %vm801 = vcmp.eq.s32.totalorder %v391, %v787
    %vm802 = vcmp.eq.s32.totalorder %v392, %v787
    %vm803 = vcmp.eq.s32.totalorder %v393, %v787
    %vm804 = vcmp.eq.s32.totalorder %v394, %v787
    %vm805 = vcmp.eq.s32.totalorder %v395, %v787
    %vm806 = vcmp.eq.s32.totalorder %v396, %v787
    %vm807 = vcmp.eq.s32.totalorder %v397, %v787
    %vm808 = vmor %vm767, %vm788
    %vm809 = vmor %vm768, %vm789
    %vm810 = vmor %vm769, %vm790
    %vm811 = vmor %vm770, %vm791
    %vm812 = vmor %vm771, %vm792
    %vm813 = vmor %vm772, %vm793
    %vm814 = vmor %vm773, %vm794
    %vm815 = vmor %vm774, %vm795
    %vm816 = vmor %vm775, %vm796
    %vm817 = vmor %vm776, %vm797
    %vm818 = vmor %vm777, %vm798
    %vm819 = vmor %vm778, %vm799
    %vm820 = vmor %vm779, %vm800
    %vm821 = vmor %vm780, %vm801
    %vm822 = vmor %vm781, %vm802
    %vm823 = vmor %vm782, %vm803
    %vm824 = vmor %vm783, %vm804
    %vm825 = vmor %vm784, %vm805
    %vm826 = vmor %vm785, %vm806
    %vm827 = vmor %vm786, %vm807
    %v828 = vadd.s32 %v318, 110
    %vm829 = vcmp.eq.s32.totalorder %v313, %v828
    %vm830 = vcmp.eq.s32.totalorder %v314, %v828
    %vm831 = vcmp.eq.s32.totalorder %v315, %v828
    %vm832 = vcmp.eq.s32.totalorder %v316, %v828
    %vm833 = vcmp.eq.s32.totalorder %v382, %v828
    %vm834 = vcmp.eq.s32.totalorder %v383, %v828
    %vm835 = vcmp.eq.s32.totalorder %v384, %v828
    %vm836 = vcmp.eq.s32.totalorder %v385, %v828
    %vm837 = vcmp.eq.s32.totalorder %v386, %v828
    %vm838 = vcmp.eq.s32.totalorder %v387, %v828
    %vm839 = vcmp.eq.s32.totalorder %v388, %v828
    %vm840 = vcmp.eq.s32.totalorder %v389, %v828
    %vm841 = vcmp.eq.s32.totalorder %v390, %v828
    %vm842 = vcmp.eq.s32.totalorder %v391, %v828
    %vm843 = vcmp.eq.s32.totalorder %v392, %v828
    %vm844 = vcmp.eq.s32.totalorder %v393, %v828
    %vm845 = vcmp.eq.s32.totalorder %v394, %v828
    %vm846 = vcmp.eq.s32.totalorder %v395, %v828
    %vm847 = vcmp.eq.s32.totalorder %v396, %v828
    %vm848 = vcmp.eq.s32.totalorder %v397, %v828
    %vm849 = vmor %vm808, %vm829
    %vm850 = vmor %vm809, %vm830
    %vm851 = vmor %vm810, %vm831
    %vm852 = vmor %vm811, %vm832
    %vm853 = vmor %vm812, %vm833
    %vm854 = vmor %vm813, %vm834
    %vm855 = vmor %vm814, %vm835
    %vm856 = vmor %vm815, %vm836
    %vm857 = vmor %vm816, %vm837
    %vm858 = vmor %vm817, %vm838
    %vm859 = vmor %vm818, %vm839
    %vm860 = vmor %vm819, %vm840
    %vm861 = vmor %vm820, %vm841
    %vm862 = vmor %vm821, %vm842
    %vm863 = vmor %vm822, %vm843
    %vm864 = vmor %vm823, %vm844
    %vm865 = vmor %vm824, %vm845
    %vm866 = vmor %vm825, %vm846
    %vm867 = vmor %vm826, %vm847
    %vm868 = vmor %vm827, %vm848
    %v869 = vadd.s32 %v318, 120
    %vm870 = vcmp.eq.s32.totalorder %v313, %v869
    %vm871 = vcmp.eq.s32.totalorder %v314, %v869
    %vm872 = vcmp.eq.s32.totalorder %v315, %v869
    %vm873 = vcmp.eq.s32.totalorder %v316, %v869
    %vm874 = vcmp.eq.s32.totalorder %v382, %v869
    %vm875 = vcmp.eq.s32.totalorder %v383, %v869
    %vm876 = vcmp.eq.s32.totalorder %v384, %v869
    %vm877 = vcmp.eq.s32.totalorder %v385, %v869
    %vm878 = vcmp.eq.s32.totalorder %v386, %v869
    %vm879 = vcmp.eq.s32.totalorder %v387, %v869
    %vm880 = vcmp.eq.s32.totalorder %v388, %v869
    %vm881 = vcmp.eq.s32.totalorder %v389, %v869
    %vm882 = vcmp.eq.s32.totalorder %v390, %v869
    %vm883 = vcmp.eq.s32.totalorder %v391, %v869
    %vm884 = vcmp.eq.s32.totalorder %v392, %v869
    %vm885 = vcmp.eq.s32.totalorder %v393, %v869
    %vm886 = vcmp.eq.s32.totalorder %v394, %v869
    %vm887 = vcmp.eq.s32.totalorder %v395, %v869
    %vm888 = vcmp.eq.s32.totalorder %v396, %v869
    %vm889 = vcmp.eq.s32.totalorder %v397, %v869
    %vm890 = vmor %vm849, %vm870
    %vm891 = vmor %vm850, %vm871
    %vm892 = vmor %vm851, %vm872
    %vm893 = vmor %vm852, %vm873
    %vm894 = vmor %vm853, %vm874
    %vm895 = vmor %vm854, %vm875
    %vm896 = vmor %vm855, %vm876
    %vm897 = vmor %vm856, %vm877
    %vm898 = vmor %vm857, %vm878
    %vm899 = vmor %vm858, %vm879
    %vm900 = vmor %vm859, %vm880
    %vm901 = vmor %vm860, %vm881
    %vm902 = vmor %vm861, %vm882
    %vm903 = vmor %vm862, %vm883
    %vm904 = vmor %vm863, %vm884
    %vm905 = vmor %vm864, %vm885
    %vm906 = vmor %vm865, %vm886
    %vm907 = vmor %vm866, %vm887
    %vm908 = vmor %vm867, %vm888
    %vm909 = vmor %vm868, %vm889
    %v910 = vadd.s32 %v318, 130
    %vm911 = vcmp.eq.s32.totalorder %v313, %v910
    %vm912 = vcmp.eq.s32.totalorder %v314, %v910
    %vm913 = vcmp.eq.s32.totalorder %v315, %v910
    %vm914 = vcmp.eq.s32.totalorder %v316, %v910
    %vm915 = vcmp.eq.s32.totalorder %v382, %v910
    %vm916 = vcmp.eq.s32.totalorder %v383, %v910
    %vm917 = vcmp.eq.s32.totalorder %v384, %v910
    %vm918 = vcmp.eq.s32.totalorder %v385, %v910
    %vm919 = vcmp.eq.s32.totalorder %v386, %v910
    %vm920 = vcmp.eq.s32.totalorder %v387, %v910
    %vm921 = vcmp.eq.s32.totalorder %v388, %v910
    %vm922 = vcmp.eq.s32.totalorder %v389, %v910
    %vm923 = vcmp.eq.s32.totalorder %v390, %v910
    %vm924 = vcmp.eq.s32.totalorder %v391, %v910
    %vm925 = vcmp.eq.s32.totalorder %v392, %v910
    %vm926 = vcmp.eq.s32.totalorder %v393, %v910
    %vm927 = vcmp.eq.s32.totalorder %v394, %v910
    %vm928 = vcmp.eq.s32.totalorder %v395, %v910
    %vm929 = vcmp.eq.s32.totalorder %v396, %v910
    %vm930 = vcmp.eq.s32.totalorder %v397, %v910
    %vm931 = vmor %vm890, %vm911
    %vm932 = vmor %vm891, %vm912
    %vm933 = vmor %vm892, %vm913
    %vm934 = vmor %vm893, %vm914
    %vm935 = vmor %vm894, %vm915
    %vm936 = vmor %vm895, %vm916
    %vm937 = vmor %vm896, %vm917
    %vm938 = vmor %vm897, %vm918
    %vm939 = vmor %vm898, %vm919
    %vm940 = vmor %vm899, %vm920
    %vm941 = vmor %vm900, %vm921
    %vm942 = vmor %vm901, %vm922
    %vm943 = vmor %vm902, %vm923
    %vm944 = vmor %vm903, %vm924
    %vm945 = vmor %vm904, %vm925
    %vm946 = vmor %vm905, %vm926
    %vm947 = vmor %vm906, %vm927
    %vm948 = vmor %vm907, %vm928
    %vm949 = vmor %vm908, %vm929
    %vm950 = vmor %vm909, %vm930
    %v951 = vadd.s32 %v318, 140
    %vm952 = vcmp.eq.s32.totalorder %v313, %v951
    %vm953 = vcmp.eq.s32.totalorder %v314, %v951
    %vm954 = vcmp.eq.s32.totalorder %v315, %v951
    %vm955 = vcmp.eq.s32.totalorder %v316, %v951
    %vm956 = vcmp.eq.s32.totalorder %v382, %v951
    %vm957 = vcmp.eq.s32.totalorder %v383, %v951
    %vm958 = vcmp.eq.s32.totalorder %v384, %v951
    %vm959 = vcmp.eq.s32.totalorder %v385, %v951
    %vm960 = vcmp.eq.s32.totalorder %v386, %v951
    %vm961 = vcmp.eq.s32.totalorder %v387, %v951
    %vm962 = vcmp.eq.s32.totalorder %v388, %v951
    %vm963 = vcmp.eq.s32.totalorder %v389, %v951
    %vm964 = vcmp.eq.s32.totalorder %v390, %v951
    %vm965 = vcmp.eq.s32.totalorder %v391, %v951
    %vm966 = vcmp.eq.s32.totalorder %v392, %v951
    %vm967 = vcmp.eq.s32.totalorder %v393, %v951
    %vm968 = vcmp.eq.s32.totalorder %v394, %v951
    %vm969 = vcmp.eq.s32.totalorder %v395, %v951
    %vm970 = vcmp.eq.s32.totalorder %v396, %v951
    %vm971 = vcmp.eq.s32.totalorder %v397, %v951
    %vm972 = vmor %vm931, %vm952
    %vm973 = vmor %vm932, %vm953
    %vm974 = vmor %vm933, %vm954
    %vm975 = vmor %vm934, %vm955
    %vm976 = vmor %vm935, %vm956
    %vm977 = vmor %vm936, %vm957
    %vm978 = vmor %vm937, %vm958
    %vm979 = vmor %vm938, %vm959
    %vm980 = vmor %vm939, %vm960
    %vm981 = vmor %vm940, %vm961
    %vm982 = vmor %vm941, %vm962
    %vm983 = vmor %vm942, %vm963
    %vm984 = vmor %vm943, %vm964
    %vm985 = vmor %vm944, %vm965
    %vm986 = vmor %vm945, %vm966
    %vm987 = vmor %vm946, %vm967
    %vm988 = vmor %vm947, %vm968
    %vm989 = vmor %vm948, %vm969
    %vm990 = vmor %vm949, %vm970
    %vm991 = vmor %vm950, %vm971
    %v992 = vadd.s32 %v318, 150
    %vm993 = vcmp.eq.s32.totalorder %v313, %v992
    %vm994 = vcmp.eq.s32.totalorder %v314, %v992
    %vm995 = vcmp.eq.s32.totalorder %v315, %v992
    %vm996 = vcmp.eq.s32.totalorder %v316, %v992
    %vm997 = vcmp.eq.s32.totalorder %v382, %v992
    %vm998 = vcmp.eq.s32.totalorder %v383, %v992
    %vm999 = vcmp.eq.s32.totalorder %v384, %v992
    %vm1000 = vcmp.eq.s32.totalorder %v385, %v992
    %vm1001 = vcmp.eq.s32.totalorder %v386, %v992
    %vm1002 = vcmp.eq.s32.totalorder %v387, %v992
    %vm1003 = vcmp.eq.s32.totalorder %v388, %v992
    %vm1004 = vcmp.eq.s32.totalorder %v389, %v992
    %vm1005 = vcmp.eq.s32.totalorder %v390, %v992
    %vm1006 = vcmp.eq.s32.totalorder %v391, %v992
    %vm1007 = vcmp.eq.s32.totalorder %v392, %v992
    %vm1008 = vcmp.eq.s32.totalorder %v393, %v992
    %vm1009 = vcmp.eq.s32.totalorder %v394, %v992
    %vm1010 = vcmp.eq.s32.totalorder %v395, %v992
    %vm1011 = vcmp.eq.s32.totalorder %v396, %v992
    %vm1012 = vcmp.eq.s32.totalorder %v397, %v992
    %vm1013 = vmor %vm972, %vm993
    %vm1014 = vmor %vm973, %vm994
    %vm1015 = vmor %vm974, %vm995
    %vm1016 = vmor %vm975, %vm996
    %vm1017 = vmor %vm976, %vm997
    %vm1018 = vmor %vm977, %vm998
    %vm1019 = vmor %vm978, %vm999
    %vm1020 = vmor %vm979, %vm1000
    %vm1021 = vmor %vm980, %vm1001
    %vm1022 = vmor %vm981, %vm1002
    %vm1023 = vmor %vm982, %vm1003
    %vm1024 = vmor %vm983, %vm1004
    %vm1025 = vmor %vm984, %vm1005
    %vm1026 = vmor %vm985, %vm1006
    %vm1027 = vmor %vm986, %vm1007
    %vm1028 = vmor %vm987, %vm1008
    %vm1029 = vmor %vm988, %vm1009
    %vm1030 = vmor %vm989, %vm1010
    %vm1031 = vmor %vm990, %vm1011
    %vm1032 = vmor %vm991, %vm1012
    %v1033 = vsel %vm1013, 1.0, 0.0
    %v1034 = vsel %vm1014, 1.0, 0.0
    %v1035 = vsel %vm1015, 1.0, 0.0
    %v1036 = vsel %vm1016, 1.0, 0.0
    %v1037 = vsel %vm1017, 1.0, 0.0
    %v1038 = vsel %vm1018, 1.0, 0.0
    %v1039 = vsel %vm1019, 1.0, 0.0
    %v1040 = vsel %vm1020, 1.0, 0.0
    %v1041 = vsel %vm1021, 1.0, 0.0
    %v1042 = vsel %vm1022, 1.0, 0.0
    %v1043 = vsel %vm1023, 1.0, 0.0
    %v1044 = vsel %vm1024, 1.0, 0.0
    %v1045 = vsel %vm1025, 1.0, 0.0
    %v1046 = vsel %vm1026, 1.0, 0.0
    %v1047 = vsel %vm1027, 1.0, 0.0
    %v1048 = vsel %vm1028, 1.0, 0.0
    %v1049 = vsel %vm1029, 1.0, 0.0
    %v1050 = vsel %vm1030, 1.0, 0.0
    %v1051 = vsel %vm1031, 1.0, 0.0
    %v1052 = vsel %vm1032, 1.0, 0.0
    %v1053 = vmul.f32 %v290, %v367
    %v1054 = vmul.f32 %v292, %v368
    %v1055 = vmul.f32 %v296, %v369
    %v1056 = vmul.f32 %v298, %v370
    %v1057 = vmul.f32 %v302, %v371
    %v1058 = vmul.f32 %v304, %v372
    %v1059 = vmul.f32 %v308, %v373
    %v1060 = vmul.f32 %v310, %v374
    %vm1061 = vcmask 261120
    %v1063 = vsel %vm1061, %v381, 0
    %1065 = vmatprep.subr.mxu0 %v1054
    %1066 = vmatpush1.msra.mxu0 %v1053
    %1067 = vmatprep.subr.mxu0 %v1056
    %1068 = vmatpush1.msra.mxu0 %v1055
    %1069 = vmatprep.subr.mxu0 %v1058
    %1070 = vmatpush1.msra.mxu0 %v1057
    %1071 = vmatprep.subr.mxu0 %v1060
    %1072 = vmatpush1.msra.mxu0 %v1059
    %1073 = vmatprep.subr.mxu0 0.0
    %1074 = vmatpush1.msra.mxu0 0.0
    %1075 = vmatprep.subr.mxu0 0.0
    %1076 = vmatpush1.msra.mxu0 0.0
    %1077 = vmatprep.subr.mxu0 0.0
    %1078 = vmatpush1.msra.mxu0 0.0
    %1079 = vmatprep.subr.mxu0 0.0
    %1080 = vmatpush1.msra.mxu0 0.0
    %1081 = vmatprep.subr.mxu0 0.0
    %1082 = vmatpush1.msra.mxu0 0.0
    %1083 = vmatprep.subr.mxu0 0.0
    %1084 = vmatpush1.msra.mxu0 0.0
    %1085 = vmatprep.subr.mxu0 0.0
    %1086 = vmatpush1.msra.mxu0 0.0
    %1087 = vmatprep.subr.mxu0 0.0
    %1088 = vmatpush1.msra.mxu0 0.0
    %1089 = vmatprep.subr.mxu0 0.0
    %1090 = vmatpush1.msra.mxu0 0.0
    %1091 = vmatprep.subr.mxu0 0.0
    %1092 = vmatpush1.msra.mxu0 0.0
    %1093 = vmatprep.subr.mxu0 0.0
    %1094 = vmatpush1.msra.mxu0 0.0
    %1095 = vmatprep.subr.mxu0 0.0
    %1096 = vmatpush1.msra.mxu0 0.0
    %1097 = vmatprep.subr.mxu0 0.0
    %1098 = vmatpush1.msra.mxu0 0.0
    %1099 = vmatprep.subr.mxu0 0.0
    %1100 = vmatpush1.msra.mxu0 0.0
    %1101 = vmatprep.subr.mxu0 0.0
    %1102 = vmatpush1.msra.mxu0 0.0
    %1103 = vmatprep.subr.mxu0 0.0
    %1104 = vmatpush1.msra.mxu0 0.0
    %1105 = vmatprep.subr.mxu0 0.0
    %1106 = vmatpush1.msra.mxu0 0.0
    %1107 = vmatprep.subr.mxu0 0.0
    %1108 = vmatpush1.msra.mxu0 0.0
    %1109 = vmatprep.subr.mxu0 0.0
    %1110 = vmatpush1.msra.mxu0 0.0
    %1111 = vmatprep.subr.mxu0 0.0
    %1112 = vmatpush1.msra.mxu0 0.0
    %1113 = vmatprep.subr.mxu0 0.0
    %1114 = vmatpush1.msra.mxu0 0.0
    %1115 = vmatprep.subr.mxu0 0.0
    %1116 = vmatpush1.msra.mxu0 0.0
    %1117 = vmatprep.subr.mxu0 0.0
    %1118 = vmatpush1.msra.mxu0 0.0
    %1119 = vmatprep.subr.mxu0 0.0
    %1120 = vmatpush1.msra.mxu0 0.0
    %1121 = vmatprep.subr.mxu0 0.0
    %1122 = vmatpush1.msra.mxu0 0.0
    %1123 = vmatprep.subr.mxu0 0.0
    %1124 = vmatpush1.msra.mxu0 0.0
    %1125 = vmatprep.subr.mxu0 0.0
    %1126 = vmatpush1.msra.mxu0 0.0
    %1127 = vmatprep.subr.mxu0 0.0
    %1128 = vmatpush1.msra.mxu0 0.0
    %1129 = vmatprep.mubr.f32.mxu0 0.0
    %1130 = vmatmul.mubr.f32.gmra.mrb[0].mxu0 %v1063
    %v1131 = vpop.f32.mrb[0].mxu0
    %v1132 = vadd.f32 0.0, %v1131
    %v1133 = vpop.f32.mrb[0].mxu0
    %v1134 = vadd.f32 0.0, %v1133
    %1135 = vdwg.mxu0
    %v1136 = vld [vmem:[%s3] sm:$0x1]
    %v1138 = vlaneseq
    %v1139 = vshrl.u32 %v1138, 7
    %v1140 = vsub.s32 0, %v1139
    %v1141 = vrot.slane %v1136, %v1140
    %v1144 = vsel %vm1061, %v1134, 0
    %1146 = vmatprep.subr.mxu0 0.0
    %1147 = vmatpush1.msra.mxu0 %v1033
    %1148 = vmatprep.subr.mxu0 0.0
    %1149 = vmatpush1.msra.mxu0 %v1034
    %1150 = vmatprep.subr.mxu0 0.0
    %1151 = vmatpush1.msra.mxu0 %v1035
    %1152 = vmatprep.subr.mxu0 0.0
    %1153 = vmatpush1.msra.mxu0 %v1036
    %1154 = vmatprep.subr.mxu0 0.0
    %1155 = vmatpush1.msra.mxu0 %v1037
    %1156 = vmatprep.subr.mxu0 0.0
    %1157 = vmatpush1.msra.mxu0 %v1038
    %1158 = vmatprep.subr.mxu0 0.0
    %1159 = vmatpush1.msra.mxu0 %v1039
    %1160 = vmatprep.subr.mxu0 0.0
    %1161 = vmatpush1.msra.mxu0 %v1040
    %1162 = vmatprep.subr.mxu0 0.0
    %1163 = vmatpush1.msra.mxu0 %v1041
    %1164 = vmatprep.subr.mxu0 0.0
    %1165 = vmatpush1.msra.mxu0 %v1042
    %1166 = vmatprep.subr.mxu0 0.0
    %1167 = vmatpush1.msra.mxu0 %v1043
    %1168 = vmatprep.subr.mxu0 0.0
    %1169 = vmatpush1.msra.mxu0 %v1044
    %1170 = vmatprep.subr.mxu0 0.0
    %1171 = vmatpush1.msra.mxu0 %v1045
    %1172 = vmatprep.subr.mxu0 0.0
    %1173 = vmatpush1.msra.mxu0 %v1046
    %1174 = vmatprep.subr.mxu0 0.0
    %1175 = vmatpush1.msra.mxu0 %v1047
    %1176 = vmatprep.subr.mxu0 0.0
    %1177 = vmatpush1.msra.mxu0 %v1048
    %1178 = vmatprep.subr.mxu0 0.0
    %1179 = vmatpush1.msra.mxu0 %v1049
    %1180 = vmatprep.subr.mxu0 0.0
    %1181 = vmatpush1.msra.mxu0 %v1050
    %1182 = vmatprep.subr.mxu0 0.0
    %1183 = vmatpush1.msra.mxu0 %v1051
    %1184 = vmatprep.subr.mxu0 0.0
    %1185 = vmatpush1.msra.mxu0 %v1052
    %1186 = vmatprep.subr.mxu0 0.0
    %1187 = vmatpush1.msra.mxu0 0.0
    %1188 = vmatprep.subr.mxu0 0.0
    %1189 = vmatpush1.msra.mxu0 0.0
    %1190 = vmatprep.subr.mxu0 0.0
    %1191 = vmatpush1.msra.mxu0 0.0
    %1192 = vmatprep.subr.mxu0 0.0
    %1193 = vmatpush1.msra.mxu0 0.0
    %1194 = vmatprep.subr.mxu0 0.0
    %1195 = vmatpush1.msra.mxu0 0.0
    %1196 = vmatprep.subr.mxu0 0.0
    %1197 = vmatpush1.msra.mxu0 0.0
    %1198 = vmatprep.subr.mxu0 0.0
    %1199 = vmatpush1.msra.mxu0 0.0
    %1200 = vmatprep.subr.mxu0 0.0
    %1201 = vmatpush1.msra.mxu0 0.0
    %1202 = vmatprep.subr.mxu0 0.0
    %1203 = vmatpush1.msra.mxu0 0.0
    %1204 = vmatprep.subr.mxu0 0.0
    %1205 = vmatpush1.msra.mxu0 0.0
    %1206 = vmatprep.subr.mxu0 0.0
    %1207 = vmatpush1.msra.mxu0 0.0
    %1208 = vmatprep.subr.mxu0 0.0
    %1209 = vmatpush1.msra.mxu0 0.0
    %1210 = vmatprep.mubr.f32.mxu0 %v1144
    %1211 = vmatmul.mubr.f32.gmra.mrb[0].mxu0 %v1132
    %v1212 = vpop.f32.mrb[0].mxu0
    %v1213 = vadd.f32 %v1141, %v1212
    %v1214 = vpop.f32.mrb[0].mxu0
    %1215 = vdwg.mxu0
    %vm1216 = vcmask 74752
    %1217 = vst.msk [vmem:[#allocation2] sm:$0x3] %vm1216, %v1213
    // Predicated region
    $region18: #{cnn_forward.1} parent=1 // pred_check
      _
    $region19: #{cnn_forward.1} parent=1 // pred_check_branch
      %1219 = sbr.rel (0) target = $region21
    $region20: #{cnn_forward.1} parent=1 // pred_region
      %s1221 = ssub.s32 32, 32
      %1222 = vsyncadd [#allocation3], %s1221
      %s1224 = sshll.u32 [#allocation2], 4
      %s1225 = int_to_ptr.vmem [resolvable:$true] %s1224
      %1227 = dma.vmem_to_hbm [thread:$0]  %s1225, 32, %s4, [#allocation3]
    $region21: #{cnn_forward.1} parent=1 // pred_fallthru
      _
    // Predicated region
    $region22: #{cnn_forward.1} parent=1 // pred_check
      _
    $region23: #{cnn_forward.1} parent=1 // pred_check_branch
      %1229 = sbr.rel (0) target = $region25
    $region24: #{cnn_forward.1} parent=1 // pred_region
      %1230 = dma.done [#allocation3], 32
    $region25: #{cnn_forward.1} parent=1 // pred_fallthru
      _
    %1231 = vsyncpa [#allocation3], 1

</llo_original>
